<compile_context>
chip_gen: v7x
topology: tpu7x:2x2x1
jax: 0.10.0
libtpu: 0.0.40
codegen_flags: <defaults>
</compile_context>

<pallas_src>
import jax
import jax.numpy as jnp
from jax.experimental import pallas as pl
from jax.experimental.pallas import tpu as pltpu


# Target bytes per block: 2 MiB.  Double-buffered input + output blocks
# (4 x 2 MiB = 8 MiB) fit comfortably inside every generation's default
# scoped VMEM (v5e: 16 MiB, v6e/v7x: 32 MiB).
_BLOCK_TARGET_BYTES = 2 * 1024 * 1024


def _copy_kernel(src_ref, dst_ref):
    # The entire forward pass: pass `commit` through unchanged.
    dst_ref[...] = src_ref[...]


def commit_loss_forward(commit: jax.Array, commit2: jax.Array = None, **kwargs) -> jax.Array:
    """Pallas implementation of CommitLoss.forward: returns `commit`."""
    del commit2, kwargs  # ignored, exactly like the PyTorch module

    nbytes = commit.size * jnp.dtype(commit.dtype).itemsize
    out_shape = jax.ShapeDtypeStruct(commit.shape, commit.dtype)

    # Small tensor (or low rank): whole array as a single VMEM block.
    if commit.ndim < 2 or nbytes <= _BLOCK_TARGET_BYTES:
        return pl.pallas_call(
            _copy_kernel,
            out_shape=out_shape,
            input_output_aliases={0: 0},
        )(commit)

    # Large tensor: tile only the leading dimension; trailing dims stay full,
    # so blocks are lane-dense and need no wrapper-side pad/reshape.
    lead = commit.shape[0]
    slice_bytes = max(nbytes // lead, 1)
    blk = 1
    for d in range(1, lead + 1):
        if lead % d == 0 and d * slice_bytes <= _BLOCK_TARGET_BYTES:
            blk = d
    grid = (lead // blk,)
    block_shape = (blk,) + commit.shape[1:]
    ndim = commit.ndim
    index_map = lambda i: (i,) + (0,) * (ndim - 1)

    return pl.pallas_call(
        _copy_kernel,
        out_shape=out_shape,
        grid=grid,
        in_specs=[pl.BlockSpec(block_shape, index_map)],
        out_specs=pl.BlockSpec(block_shape, index_map),
        input_output_aliases={0: 0},
        compiler_params=pltpu.CompilerParams(
            dimension_semantics=("parallel",),
            # Headroom for the blk=1 case where one leading slice exceeds the
            # 2 MiB target; 32 MiB is below physical VMEM on all generations.
            vmem_limit_bytes=32 * 1024 * 1024,
        ),
    )(commit)


if __name__ == "__main__":
    key = jax.random.PRNGKey(0)
    k1, k2, k3 = jax.random.split(key, 3)

    # Small shapes consistent with a VQ commitment-loss tensor (NCHW layout).
    commit = jax.random.normal(k1, (2, 4, 16, 16), dtype=jnp.float32)
    commit2 = jax.random.normal(k2, (2, 4, 16, 16), dtype=jnp.float32)

    out = commit_loss_forward(commit, commit2)
    out = jax.block_until_ready(out)
    assert out.shape == commit.shape
    assert out.dtype == commit.dtype
    assert bool(jnp.allclose(out, commit))

    # Also exercise the tiled (grid) path with a modestly larger tensor
    # (8 * 64 * 64 * 32 * 4B = 4 MiB > 2 MiB target -> grid of 2 blocks).
    big = jax.random.normal(k3, (8, 64, 64, 32), dtype=jnp.float32)
    big2 = jnp.zeros_like(big)
    out_big = jax.block_until_ready(commit_loss_forward(big, big2))
    assert out_big.shape == big.shape
    assert bool(jnp.allclose(out_big, big))

    print("KERNEL_OK")
</pallas_src>

<mosaic_0001>
module attributes {stable_mosaic.version = 11 : i64} {
  func.func @_copy_kernel(%arg0: memref<2x4x16x16xf32, #tpu.memory_space<vmem>>, %arg1: memref<2x4x16x16xf32, #tpu.memory_space<vmem>>) attributes {dimension_semantics = [], scalar_prefetch = 0 : i64, scratch_operands = 0 : i64, tpu.core_type = #tpu.core_type<tc>} {
    %c0 = arith.constant 0 : index
    %c0_0 = arith.constant 0 : index
    %c0_1 = arith.constant 0 : index
    %c0_2 = arith.constant 0 : index
    %0 = vector.load %arg0[%c0, %c0_0, %c0_1, %c0_2] : memref<2x4x16x16xf32, #tpu.memory_space<vmem>>, vector<2x4x16x16xf32>
    %c0_3 = arith.constant 0 : index
    %c0_4 = arith.constant 0 : index
    %c0_5 = arith.constant 0 : index
    %c0_6 = arith.constant 0 : index
    %1 = vector.load %arg1[%c0_3, %c0_4, %c0_5, %c0_6] : memref<2x4x16x16xf32, #tpu.memory_space<vmem>>, vector<2x4x16x16xf32>
    tpu.vector_store %arg1[%c0_3, %c0_4, %c0_5, %c0_6], %0 {strides = array<i32>} : memref<2x4x16x16xf32, #tpu.memory_space<vmem>>, vector<2x4x16x16xf32>,
    return
  }
}

</mosaic_0001>

<llo_original>
// kernel: tpu_custom_call.1
$region0: #{tpu_custom_call.1}
  #allocation0 [shape = 'u32[]', space=smem, size = 0x4, offset = 0x4, fixed_abs, tag = 'smem constant byte address 0x4 - core index']
  #allocation1 [shape = 'u32[144,128]{1,0:T(1,128)}', space=vmem, size = 0x12000, scoped, tag = 'internal scratch']
  %s0 = inlined_call_operand.hbm [shape: f32[2,4,16,16], index: 0, kind: input, shape index: {}, may-alias: {0,1}]
  %s1 = inlined_call_operand.hbm [shape: f32[2,4,16,16], index: 1, kind: output, shape index: {}, may-alias: {0,1}]
  %s2 = sld [smem:[#allocation0]]
  $region18: #{tpu_custom_call.1} parent=0
    _
  %s4 = ssub.s32 1, %s2
  %s5 = scalar_select 0, %s4, %s2
  $region1: #{tpu_custom_call.1} parent=0
    #allocation2 [shape = 'u8[65536]{0}', space=vmem, size = 0x10000, scoped, tag = 'input window, operand 0, single buffered']
    #allocation3 [shape = 's32[1]{0}', space=sflag, size = 0x4, scoped, tag = 'scoped memory for tpu_custom_call.1']
    #allocation4 [shape = 's32[1]{0}', space=sflag, size = 0x4, scoped, tag = 'scoped memory for tpu_custom_call.1']
    #allocation5 [shape = 'u8[65536]{0}', space=vmem, size = 0x10000, scoped, tag = 'output window, operand 0, single buffered']
    %6 = vsyncpa [#allocation3], 0
    %7 = vsyncpa [#allocation4], 0
    // Predicated region
    $region2: #{tpu_custom_call.1} parent=1 // pred_check
      _
    $region3: #{tpu_custom_call.1} parent=1 // pred_check_branch
      %9 = sbr.rel (0) target = $region5
    $region4: #{tpu_custom_call.1} parent=1 // pred_region
      %s11 = ssub.s32 2048, 2048
      %12 = vsyncadd [#allocation3], %s11
      %s13 = sshll.u32 [#allocation2], 4
      %s14 = int_to_ptr.vmem [resolvable:$true] %s13
      %19 = dma.hbm_to_vmem [thread:$0]  %s0, 2048, %s14, [#allocation3], 128, 128, 8
    $region5: #{tpu_custom_call.1} parent=1 // pred_fallthru
      _
    // Predicated region
    $region6: #{tpu_custom_call.1} parent=1 // pred_check
      _
    $region7: #{tpu_custom_call.1} parent=1 // pred_check_branch
      %21 = sbr.rel (0) target = $region9
    $region8: #{tpu_custom_call.1} parent=1 // pred_region
      %22 = dma.done [#allocation3], 2048
    $region9: #{tpu_custom_call.1} parent=1 // pred_fallthru
      _
    %v23 = vld [vmem:[#allocation2] sm:$0xff]
    %v24 = vld [vmem:[#allocation2 + $0x8] sm:$0xff]
    %v25 = vld [vmem:[#allocation2 + $0x10] sm:$0xff]
    %v26 = vld [vmem:[#allocation2 + $0x18] sm:$0xff]
    %v27 = vld [vmem:[#allocation2 + $0x20] sm:$0xff]
    %v28 = vld [vmem:[#allocation2 + $0x28] sm:$0xff]
    %v29 = vld [vmem:[#allocation2 + $0x30] sm:$0xff]
    %v30 = vld [vmem:[#allocation2 + $0x38] sm:$0xff]
    %v31 = vld [vmem:[#allocation2 + $0x40] sm:$0xff]
    %v32 = vld [vmem:[#allocation2 + $0x48] sm:$0xff]
    %v33 = vld [vmem:[#allocation2 + $0x50] sm:$0xff]
    %v34 = vld [vmem:[#allocation2 + $0x58] sm:$0xff]
    %v35 = vld [vmem:[#allocation2 + $0x60] sm:$0xff]
    %v36 = vld [vmem:[#allocation2 + $0x68] sm:$0xff]
    %v37 = vld [vmem:[#allocation2 + $0x70] sm:$0xff]
    %v38 = vld [vmem:[#allocation2 + $0x78] sm:$0xff]
    %vm39 = vcmask 130048
    %40 = vst.msk [vmem:[#allocation5] sm:$0xff] %vm39, %v23
    %41 = vst.msk [vmem:[#allocation5 + $0x8] sm:$0xff] %vm39, %v24
    %42 = vst.msk [vmem:[#allocation5 + $0x10] sm:$0xff] %vm39, %v25
    %43 = vst.msk [vmem:[#allocation5 + $0x18] sm:$0xff] %vm39, %v26
    %44 = vst.msk [vmem:[#allocation5 + $0x20] sm:$0xff] %vm39, %v27
    %45 = vst.msk [vmem:[#allocation5 + $0x28] sm:$0xff] %vm39, %v28
    %46 = vst.msk [vmem:[#allocation5 + $0x30] sm:$0xff] %vm39, %v29
    %47 = vst.msk [vmem:[#allocation5 + $0x38] sm:$0xff] %vm39, %v30
    %48 = vst.msk [vmem:[#allocation5 + $0x40] sm:$0xff] %vm39, %v31
    %49 = vst.msk [vmem:[#allocation5 + $0x48] sm:$0xff] %vm39, %v32
    %50 = vst.msk [vmem:[#allocation5 + $0x50] sm:$0xff] %vm39, %v33
    %51 = vst.msk [vmem:[#allocation5 + $0x58] sm:$0xff] %vm39, %v34
    %52 = vst.msk [vmem:[#allocation5 + $0x60] sm:$0xff] %vm39, %v35
    %53 = vst.msk [vmem:[#allocation5 + $0x68] sm:$0xff] %vm39, %v36
    %54 = vst.msk [vmem:[#allocation5 + $0x70] sm:$0xff] %vm39, %v37
    %55 = vst.msk [vmem:[#allocation5 + $0x78] sm:$0xff] %vm39, %v38
    // Predicated region
    $region10: #{tpu_custom_call.1} parent=1 // pred_check
      _
    $region11: #{tpu_custom_call.1} parent=1 // pred_check_branch
      %57 = sbr.rel (0) target = $region13
    $region12: #{tpu_custom_call.1} parent=1 // pred_region
      %s59 = ssub.s32 2048, 2048
      %60 = vsyncadd [#allocation4], %s59
      %s61 = sshll.u32 [#allocation5], 4
      %s62 = int_to_ptr.vmem [resolvable:$true] %s61
      %67 = dma.vmem_to_hbm [thread:$0]  %s62, 2048, %s1, [#allocation4], 128, 128, 8
    $region13: #{tpu_custom_call.1} parent=1 // pred_fallthru
      _
    // Predicated region
    $region14: #{tpu_custom_call.1} parent=1 // pred_check
      _
    $region15: #{tpu_custom_call.1} parent=1 // pred_check_branch
      %69 = sbr.rel (0) target = $region17
    $region16: #{tpu_custom_call.1} parent=1 // pred_region
      %70 = dma.done [#allocation4], 2048
    $region17: #{tpu_custom_call.1} parent=1 // pred_fallthru
      _
    %71 = vsyncpa [#allocation3], 1
    %72 = vsyncpa [#allocation4], 1

</llo_original>
